<compile_context>
chip_gen: v6e
topology: v6e:2x2x1
jax: 0.10.0
libtpu: 0.0.40
codegen_flags: <defaults>
</compile_context>

<pallas_src>
import jax
import jax.numpy as jnp
from jax.experimental import pallas as pl
from jax.experimental.pallas import tpu as pltpu

M, N = 128, 128  # parameter shape from nn.Parameter(torch.rand((128, 128)))

_VMEM_LIMIT_BYTES = 48 << 20  # safe on v5e/v6e (128 MiB) and v7x (64 MiB phys)


def _net_kernel(mem_ref, x_ref, o_ref):
    # Elementwise multiply + clamp(0, 1); pure VPU work on matching shapes.
    o_ref[...] = jnp.clip(mem_ref[...] * x_ref[...], 0.0, 1.0)


def _net_kernel_batched(mem_ref, x_ref, o_ref):
    # mem_ref: (M, N), VMEM-resident; x_ref/o_ref: (b_tile, M, N).
    # Implicit broadcast over the leading batch axis — no materialized temp.
    o_ref[...] = jnp.clip(mem_ref[...] * x_ref[...], 0.0, 1.0)


def _pick_b_tile(B, requested=None):
    """Pick a batch tile: >= ~8 grid steps for pipelining / 2-core split,
    tiles capped at 128 rows (32 MiB double-buffered x+out) for v7x VMEM."""
    if requested is None:
        t = max(1, min(64, pl.cdiv(B, 8)))
    else:
        t = max(1, min(requested, 128))
    return min(t, B)


def net_forward(memory, x):
    """Single (128, 128) input: flat, grid-free, VMEM-resident call.

    Note: a lone 64 KiB x 3 problem is launch-bound; prefer the batched path
    (net_forward_batched) whenever multiple inputs are available."""
    assert memory.shape == (M, N) and x.shape == (M, N)
    return pl.pallas_call(
        _net_kernel,
        out_shape=jax.ShapeDtypeStruct((M, N), x.dtype),
        in_specs=[
            pl.BlockSpec(memory_space=pltpu.MemorySpace.VMEM),
            pl.BlockSpec(memory_space=pltpu.MemorySpace.VMEM),
        ],
        out_specs=pl.BlockSpec(memory_space=pltpu.MemorySpace.VMEM),
    )(memory, x)


def net_forward_batched(memory, x, *, b_tile=None):
    """Batched (B, 128, 128) input: amortize launch overhead over the batch.

    Tiles the batch axis (lane axis stays at 128 -> unmasked stores), keeps
    `memory` whole-array resident in VMEM, handles non-divisible B with a
    cdiv grid, and raises the scoped VMEM limit so the double-buffered tiles
    fit on every generation without spilling."""
    assert memory.shape == (M, N)
    B = x.shape[0]
    assert x.shape == (B, M, N)
    bt = _pick_b_tile(B, b_tile)
    grid = (pl.cdiv(B, bt),)

    return pl.pallas_call(
        _net_kernel_batched,
        out_shape=jax.ShapeDtypeStruct((B, M, N), x.dtype),
        grid=grid,
        in_specs=[
            # memory: whole-array, VMEM-resident (copied in once, no
            # per-step double-buffering of a constant operand).
            pl.BlockSpec(memory_space=pltpu.MemorySpace.VMEM),
            # x: tiled along the batch axis, double-buffered by the pipeline.
            pl.BlockSpec((bt, M, N), lambda i: (i, 0, 0)),
        ],
        out_specs=pl.BlockSpec((bt, M, N), lambda i: (i, 0, 0)),
        compiler_params=pltpu.CompilerParams(
            dimension_semantics=("parallel",),
            vmem_limit_bytes=_VMEM_LIMIT_BYTES,
        ),
    )(memory, x)


if __name__ == "__main__":
    key = jax.random.PRNGKey(0)
    k_mem, k_x, k_xb, k_xr = jax.random.split(key, 4)

    # Deterministic "parameter": uniform [0, 1) like torch.rand((128, 128)).
    memory = jax.random.uniform(k_mem, (M, N), dtype=jnp.float32)

    # --- single-input path (matches the module's forward exactly) ---
    x = jax.random.normal(k_x, (M, N), dtype=jnp.float32)
    ref = jnp.clip(memory * x, 0.0, 1.0)
    out = jax.block_until_ready(net_forward(memory, x))
    assert out.shape == (M, N)
    assert jnp.allclose(out, ref, atol=1e-6), "single-input mismatch vs reference"

    # --- batched path, divisible batch (B=32 -> b_tile=4 -> 8 grid steps) ---
    B = 32
    xb = jax.random.normal(k_xb, (B, M, N), dtype=jnp.float32)
    ref_b = jnp.clip(memory[None] * xb, 0.0, 1.0)
    out_b = jax.block_until_ready(net_forward_batched(memory, xb))
    assert out_b.shape == (B, M, N)
    assert jnp.allclose(out_b, ref_b, atol=1e-6), "batched mismatch vs reference"

    # --- batched path, non-divisible batch (B=10, b_tile=4 -> cdiv grid=3) ---
    Br = 10
    xr = jax.random.normal(k_xr, (Br, M, N), dtype=jnp.float32)
    ref_r = jnp.clip(memory[None] * xr, 0.0, 1.0)
    out_r = jax.block_until_ready(net_forward_batched(memory, xr, b_tile=4))
    assert out_r.shape == (Br, M, N)
    assert jnp.allclose(out_r, ref_r, atol=1e-6), "ragged batch mismatch vs reference"

    print("KERNEL_OK")
</pallas_src>

<mosaic_0001>
module attributes {stable_mosaic.version = 11 : i64} {
  func.func @_net_kernel(%arg0: memref<128x128xf32, #tpu.memory_space<vmem>>, %arg1: memref<128x128xf32, #tpu.memory_space<vmem>>, %arg2: memref<128x128xf32, #tpu.memory_space<vmem>>) attributes {dimension_semantics = [], scalar_prefetch = 0 : i64, scratch_operands = 0 : i64, tpu.core_type = #tpu.core_type<tc>} {
    %c0 = arith.constant 0 : index
    %c0_0 = arith.constant 0 : index
    %0 = vector.load %arg0[%c0, %c0_0] : memref<128x128xf32, #tpu.memory_space<vmem>>, vector<128x128xf32>
    %c0_1 = arith.constant 0 : index
    %c0_2 = arith.constant 0 : index
    %1 = vector.load %arg1[%c0_1, %c0_2] : memref<128x128xf32, #tpu.memory_space<vmem>>, vector<128x128xf32>
    %2 = arith.mulf %0, %1 : vector<128x128xf32>
    %cst = arith.constant 0.000000e+00 : f32
    %cst_3 = arith.constant 1.000000e+00 : f32
    %3 = vector.broadcast %cst : f32 to vector<128x128xf32>
    %4 = arith.maximumf %3, %2 : vector<128x128xf32>
    %5 = vector.broadcast %cst_3 : f32 to vector<128x128xf32>
    %6 = arith.minimumf %5, %4 : vector<128x128xf32>
    %c0_4 = arith.constant 0 : index
    %c0_5 = arith.constant 0 : index
    %7 = vector.load %arg2[%c0_4, %c0_5] : memref<128x128xf32, #tpu.memory_space<vmem>>, vector<128x128xf32>
    tpu.vector_store %arg2[%c0_4, %c0_5], %6 {strides = array<i32>} : memref<128x128xf32, #tpu.memory_space<vmem>>, vector<128x128xf32>,
    return
  }
}

</mosaic_0001>

<llo_original>
// kernel: tpu_custom_call.1
$region0: #{tpu_custom_call.1}
  #allocation0 [shape = 'u32[]', space=smem, size = 0x4, offset = 0x4, fixed_abs, tag = 'smem constant byte address 0x4 - core index']
  #allocation1 [shape = 'u32[144,128]{1,0:T(1,128)}', space=vmem, size = 0x12000, scoped, tag = 'internal scratch']
  %s0 = inlined_call_operand.hbm [shape: f32[128,128], index: 0, kind: input, shape index: {}]
  %s1 = inlined_call_operand.hbm [shape: f32[128,128], index: 1, kind: input, shape index: {}]
  %s2 = inlined_call_operand.hbm [shape: f32[128,128], index: 2, kind: output, shape index: {}]
  %s3 = sld [smem:[#allocation0]]
  $region26: #{tpu_custom_call.1} parent=0
    _
  %s5 = ssub.s32 1, %s3
  %s6 = scalar_select 0, %s5, %s3
  $region1: #{tpu_custom_call.1} parent=0
    #allocation2 [shape = 'u8[65536]{0}', space=vmem, size = 0x10000, scoped, tag = 'input window, operand 0, single buffered']
    #allocation3 [shape = 's32[1]{0}', space=sflag, size = 0x4, scoped, tag = 'scoped memory for tpu_custom_call.1']
    #allocation4 [shape = 's32[1]{0}', space=sflag, size = 0x4, scoped, tag = 'scoped memory for tpu_custom_call.1']
    #allocation5 [shape = 'u8[65536]{0}', space=vmem, size = 0x10000, scoped, tag = 'input window, operand 1, single buffered']
    #allocation6 [shape = 's32[1]{0}', space=sflag, size = 0x4, scoped, tag = 'scoped memory for tpu_custom_call.1']
    #allocation7 [shape = 'u8[65536]{0}', space=vmem, size = 0x10000, scoped, tag = 'output window, operand 0, single buffered']
    %7 = vsyncpa [#allocation3], 0
    %8 = vsyncpa [#allocation6], 0
    %9 = vsyncpa [#allocation4], 0
    // Predicated region
    $region2: #{tpu_custom_call.1} parent=1 // pred_check
      _
    $region3: #{tpu_custom_call.1} parent=1 // pred_check_branch
      %11 = sbr.rel (0) target = $region5
    $region4: #{tpu_custom_call.1} parent=1 // pred_region
      %s13 = ssub.s32 2048, 2048
      %14 = vsyncadd [#allocation3], %s13
      %s15 = sshll.u32 [#allocation2], 4
      %s16 = int_to_ptr.vmem [resolvable:$true] %s15
      %21 = dma.hbm_to_vmem [thread:$0]  %s0, 2048, %s16, [#allocation3], 128, 128, 8
    $region5: #{tpu_custom_call.1} parent=1 // pred_fallthru
      _
    // Predicated region
    $region6: #{tpu_custom_call.1} parent=1 // pred_check
      _
    $region7: #{tpu_custom_call.1} parent=1 // pred_check_branch
      %23 = sbr.rel (0) target = $region9
    $region8: #{tpu_custom_call.1} parent=1 // pred_region
      %s25 = ssub.s32 2048, 2048
      %26 = vsyncadd [#allocation6], %s25
      %s27 = sshll.u32 [#allocation5], 4
      %s28 = int_to_ptr.vmem [resolvable:$true] %s27
      %33 = dma.hbm_to_vmem [thread:$0]  %s1, 2048, %s28, [#allocation6], 128, 128, 8
    $region9: #{tpu_custom_call.1} parent=1 // pred_fallthru
      _
    // Predicated region
    $region10: #{tpu_custom_call.1} parent=1 // pred_check
      _
    $region11: #{tpu_custom_call.1} parent=1 // pred_check_branch
      %35 = sbr.rel (0) target = $region13
    $region12: #{tpu_custom_call.1} parent=1 // pred_region
      %36 = dma.done [#allocation3], 2048
    $region13: #{tpu_custom_call.1} parent=1 // pred_fallthru
      _
    // Predicated region
    $region14: #{tpu_custom_call.1} parent=1 // pred_check
      _
    $region15: #{tpu_custom_call.1} parent=1 // pred_check_branch
      %38 = sbr.rel (0) target = $region17
    $region16: #{tpu_custom_call.1} parent=1 // pred_region
      %39 = dma.done [#allocation6], 2048
    $region17: #{tpu_custom_call.1} parent=1 // pred_fallthru
      _
    %v40 = vld [vmem:[#allocation2] sm:$0xff]
    %v41 = vld [vmem:[#allocation2 + $0x8] sm:$0xff]
    %v42 = vld [vmem:[#allocation2 + $0x10] sm:$0xff]
    %v43 = vld [vmem:[#allocation2 + $0x18] sm:$0xff]
    %v44 = vld [vmem:[#allocation2 + $0x20] sm:$0xff]
    %v45 = vld [vmem:[#allocation2 + $0x28] sm:$0xff]
    %v46 = vld [vmem:[#allocation2 + $0x30] sm:$0xff]
    %v47 = vld [vmem:[#allocation2 + $0x38] sm:$0xff]
    %v48 = vld [vmem:[#allocation2 + $0x40] sm:$0xff]
    %v49 = vld [vmem:[#allocation2 + $0x48] sm:$0xff]
    %v50 = vld [vmem:[#allocation2 + $0x50] sm:$0xff]
    %v51 = vld [vmem:[#allocation2 + $0x58] sm:$0xff]
    %v52 = vld [vmem:[#allocation2 + $0x60] sm:$0xff]
    %v53 = vld [vmem:[#allocation2 + $0x68] sm:$0xff]
    %v54 = vld [vmem:[#allocation2 + $0x70] sm:$0xff]
    %v55 = vld [vmem:[#allocation2 + $0x78] sm:$0xff]
    %v56 = vld [vmem:[#allocation5] sm:$0xff]
    %v57 = vld [vmem:[#allocation5 + $0x8] sm:$0xff]
    %v58 = vld [vmem:[#allocation5 + $0x10] sm:$0xff]
    %v59 = vld [vmem:[#allocation5 + $0x18] sm:$0xff]
    %v60 = vld [vmem:[#allocation5 + $0x20] sm:$0xff]
    %v61 = vld [vmem:[#allocation5 + $0x28] sm:$0xff]
    %v62 = vld [vmem:[#allocation5 + $0x30] sm:$0xff]
    %v63 = vld [vmem:[#allocation5 + $0x38] sm:$0xff]
    %v64 = vld [vmem:[#allocation5 + $0x40] sm:$0xff]
    %v65 = vld [vmem:[#allocation5 + $0x48] sm:$0xff]
    %v66 = vld [vmem:[#allocation5 + $0x50] sm:$0xff]
    %v67 = vld [vmem:[#allocation5 + $0x58] sm:$0xff]
    %v68 = vld [vmem:[#allocation5 + $0x60] sm:$0xff]
    %v69 = vld [vmem:[#allocation5 + $0x68] sm:$0xff]
    %v70 = vld [vmem:[#allocation5 + $0x70] sm:$0xff]
    %v71 = vld [vmem:[#allocation5 + $0x78] sm:$0xff]
    %v72 = vmul.f32 %v40, %v56
    %v73 = vmul.f32 %v41, %v57
    %v74 = vmul.f32 %v42, %v58
    %v75 = vmul.f32 %v43, %v59
    %v76 = vmul.f32 %v44, %v60
    %v77 = vmul.f32 %v45, %v61
    %v78 = vmul.f32 %v46, %v62
    %v79 = vmul.f32 %v47, %v63
    %v80 = vmul.f32 %v48, %v64
    %v81 = vmul.f32 %v49, %v65
    %v82 = vmul.f32 %v50, %v66
    %v83 = vmul.f32 %v51, %v67
    %v84 = vmul.f32 %v52, %v68
    %v85 = vmul.f32 %v53, %v69
    %v86 = vmul.f32 %v54, %v70
    %v87 = vmul.f32 %v55, %v71
    %v88 = vmax.f32 %v72, 0.0
    %v89 = vmax.f32 %v73, 0.0
    %v90 = vmax.f32 %v74, 0.0
    %v91 = vmax.f32 %v75, 0.0
    %v92 = vmax.f32 %v76, 0.0
    %v93 = vmax.f32 %v77, 0.0
    %v94 = vmax.f32 %v78, 0.0
    %v95 = vmax.f32 %v79, 0.0
    %v96 = vmax.f32 %v80, 0.0
    %v97 = vmax.f32 %v81, 0.0
    %v98 = vmax.f32 %v82, 0.0
    %v99 = vmax.f32 %v83, 0.0
    %v100 = vmax.f32 %v84, 0.0
    %v101 = vmax.f32 %v85, 0.0
    %v102 = vmax.f32 %v86, 0.0
    %v103 = vmax.f32 %v87, 0.0
    %v104 = vmin.f32 %v88, 1.0
    %v105 = vmin.f32 %v89, 1.0
    %v106 = vmin.f32 %v90, 1.0
    %v107 = vmin.f32 %v91, 1.0
    %v108 = vmin.f32 %v92, 1.0
    %v109 = vmin.f32 %v93, 1.0
    %v110 = vmin.f32 %v94, 1.0
    %v111 = vmin.f32 %v95, 1.0
    %v112 = vmin.f32 %v96, 1.0
    %v113 = vmin.f32 %v97, 1.0
    %v114 = vmin.f32 %v98, 1.0
    %v115 = vmin.f32 %v99, 1.0
    %v116 = vmin.f32 %v100, 1.0
    %v117 = vmin.f32 %v101, 1.0
    %v118 = vmin.f32 %v102, 1.0
    %v119 = vmin.f32 %v103, 1.0
    %120 = vst [vmem:[#allocation7] sm:$0xff] %v104
    %121 = vst [vmem:[#allocation7 + $0x8] sm:$0xff] %v105
    %122 = vst [vmem:[#allocation7 + $0x10] sm:$0xff] %v106
    %123 = vst [vmem:[#allocation7 + $0x18] sm:$0xff] %v107
    %124 = vst [vmem:[#allocation7 + $0x20] sm:$0xff] %v108
    %125 = vst [vmem:[#allocation7 + $0x28] sm:$0xff] %v109
    %126 = vst [vmem:[#allocation7 + $0x30] sm:$0xff] %v110
    %127 = vst [vmem:[#allocation7 + $0x38] sm:$0xff] %v111
    %128 = vst [vmem:[#allocation7 + $0x40] sm:$0xff] %v112
    %129 = vst [vmem:[#allocation7 + $0x48] sm:$0xff] %v113
    %130 = vst [vmem:[#allocation7 + $0x50] sm:$0xff] %v114
    %131 = vst [vmem:[#allocation7 + $0x58] sm:$0xff] %v115
    %132 = vst [vmem:[#allocation7 + $0x60] sm:$0xff] %v116
    %133 = vst [vmem:[#allocation7 + $0x68] sm:$0xff] %v117
    %134 = vst [vmem:[#allocation7 + $0x70] sm:$0xff] %v118
    %135 = vst [vmem:[#allocation7 + $0x78] sm:$0xff] %v119
    // Predicated region
    $region18: #{tpu_custom_call.1} parent=1 // pred_check
      _
    $region19: #{tpu_custom_call.1} parent=1 // pred_check_branch
      %137 = sbr.rel (0) target = $region21
    $region20: #{tpu_custom_call.1} parent=1 // pred_region
      %s139 = ssub.s32 2048, 2048
      %140 = vsyncadd [#allocation4], %s139
      %s141 = sshll.u32 [#allocation7], 4
      %s142 = int_to_ptr.vmem [resolvable:$true] %s141
      %147 = dma.vmem_to_hbm [thread:$0]  %s142, 2048, %s2, [#allocation4], 128, 128, 8
    $region21: #{tpu_custom_call.1} parent=1 // pred_fallthru
      _
    // Predicated region
    $region22: #{tpu_custom_call.1} parent=1 // pred_check
      _
    $region23: #{tpu_custom_call.1} parent=1 // pred_check_branch
      %149 = sbr.rel (0) target = $region25
    $region24: #{tpu_custom_call.1} parent=1 // pred_region
      %150 = dma.done [#allocation4], 2048
    $region25: #{tpu_custom_call.1} parent=1 // pred_fallthru
      _
    %151 = vsyncpa [#allocation3], 1
    %152 = vsyncpa [#allocation6], 1
    %153 = vsyncpa [#allocation4], 1

</llo_original>
